<compile_context>
chip_gen: v6e
topology: v6e:2x2x1
jax: 0.10.0
libtpu: 0.0.40
codegen_flags: <defaults>
</compile_context>

<pallas_src>
import functools

import jax
import jax.numpy as jnp
from jax.experimental import pallas as pl
from jax.experimental.pallas import tpu as pltpu

NORM_EPS = 1e-12   # F.normalize eps
GN_EPS = 1e-5      # nn.GroupNorm eps


# --------------------------------------------------------------------------
# Pass 1: per-channel sum / sum-of-squares, accumulated across spatial tiles.
# The accumulation is only correct because the LAST grid axis is 'arbitrary'
# and the output block index is constant across it (resident accumulator).
# --------------------------------------------------------------------------
def _gn_stats_kernel(x_ref, out_ref):
    @pl.when(pl.program_id(2) == 0)
    def _():
        out_ref[...] = jnp.zeros_like(out_ref)

    x = x_ref[...]                                   # (C, LT) f32
    out_ref[:, 0:1] += jnp.sum(x, axis=1, keepdims=True)
    out_ref[:, 1:2] += jnp.sum(x * x, axis=1, keepdims=True)


# --------------------------------------------------------------------------
# Pass 2: attention conv + feature adapter + GroupNorm affine + FFN.
# --------------------------------------------------------------------------
def _ipg_main_kernel(x_ref, halo_ref, gn_ref, wcat_ref, wfa_ref, w1_ref,
                     w2_ref, bias_ref, out_ref, xnpad_ref, xcat_ref,
                     *, W, TH, C, C_pad, pad0, cdt):
    L = TH * W
    base = pad0 + W                     # scratch index of tile pixel (0, 0)

    # ---- 1) L2-normalize the main tile ONCE (per pixel, over channels) ----
    x = x_ref[...]                                   # (C, L) f32
    inv = jax.lax.rsqrt(jnp.maximum(jnp.sum(x * x, axis=0, keepdims=True),
                                    NORM_EPS * NORM_EPS))
    xnpad_ref[:, base:base + L] = (x * inv).astype(cdt)    # lane-aligned store

    # ---- 2) halo rows (pre-normalized, already zero at image borders) ----
    halo = halo_ref[...].astype(cdt)                 # (C, 2W)
    xnpad_ref[:, pad0:pad0 + W] = halo[:, :W]               # row above tile
    xnpad_ref[:, base + L:base + L + W] = halo[:, W:]       # row below tile
    # guard cells only ever feed masked tap positions; zeroed for hygiene
    xnpad_ref[:, pad0 - 1:pad0] = jnp.zeros((C, 1), cdt)
    xnpad_ref[:, base + L + W:base + L + W + 1] = jnp.zeros((C, 1), cdt)

    # ---- 3) scatter 9 shifted taps into an explicit VMEM matmul operand ----
    col = jax.lax.broadcasted_iota(jnp.int32, (1, L), 1) % W
    not_left = col > 0                  # dx = -1 valid
    not_right = col < W - 1             # dx = +1 valid
    zero = jnp.zeros((), cdt)
    k = 0
    for dy in (-1, 0, 1):
        for dx in (-1, 0, 1):
            off = base + dy * W + dx
            tap = xnpad_ref[:, off:off + L]          # (C, L) static slice
            if dx == -1:
                tap = jnp.where(not_left, tap, zero)
            elif dx == 1:
                tap = jnp.where(not_right, tap, zero)
            xcat_ref[k * C_pad:k * C_pad + C, :] = tap
            if C_pad > C:                            # keep padded K rows clean
                xcat_ref[k * C_pad + C:(k + 1) * C_pad, :] = (
                    jnp.zeros((C_pad - C, L), cdt))
            k += 1

    # ---- 4) attention conv: one fused K = 9*C_pad MXU matmul + sigmoid ----
    att = jax.nn.sigmoid(
        jnp.dot(wcat_ref[...], xcat_ref[...],
                preferred_element_type=jnp.float32))        # (C, L) f32

    # ---- 5) enhanced = feature_adapter(x * att) + GroupNorm(x) ----
    b_fa = bias_ref[0:C, 1:2]
    b1 = bias_ref[:, 0:1]
    b2 = bias_ref[C:2 * C, 1:2]
    enhanced = jnp.dot(wfa_ref[...], (x * att).astype(cdt),
                       preferred_element_type=jnp.float32) + b_fa
    enhanced = enhanced + x * gn_ref[:, 0:1] + gn_ref[:, 1:2]

    # ---- 6) conv_ffn (1x1 -> ReLU -> 1x1) + residual ----
    h = jnp.maximum(jnp.dot(w1_ref[...], enhanced.astype(cdt),
                            preferred_element_type=jnp.float32) + b1, 0.0)
    ffn = jnp.dot(w2_ref[...], h.astype(cdt),
                  preferred_element_type=jnp.float32) + b2
    out_ref[...] = (enhanced + ffn).astype(out_ref.dtype)


# --------------------------------------------------------------------------
# Wrapper helpers
# --------------------------------------------------------------------------
def _pad0(W):
    p = (-W) % 128
    return p if p != 0 else 128


def _vmem_capacity_bytes():
    try:
        cap = int(pltpu.get_tpu_info().vmem_capacity_bytes)
        if cap > 0:
            return max(32 * 2**20, min(cap, 128 * 2**20))
    except Exception:
        pass
    return 64 * 2**20   # conservative fallback (v7x per-TC VMEM)


def _choose_tile_rows(H, W, C, C_pad, itemsize_c, budget_bytes):
    """Largest row-tile whose per-step VMEM footprint fits the budget while
    keeping the (8,128) block constraint ((TH*W) % 128 == 0 or full H)."""
    valid = [th for th in range(1, H + 1)
             if H % th == 0 and ((th * W) % 128 == 0 or th == H)]

    def est(th):
        lt = th * W
        io = lt * C * 4 * 2 * 2                      # f32 in + out, double-buffered
        halo = 2 * W * C * 4 * 2
        xnpad = (_pad0(W) + (th + 2) * W + 1) * C * itemsize_c
        xcat = 9 * C_pad * lt * itemsize_c
        return io + halo + xnpad + xcat

    fits = [th for th in valid if est(th) <= budget_bytes]
    if not fits:
        return min(valid)
    if C >= 128:   # only chase MXU-friendly N tiles when the matmul matters
        fits256 = [th for th in fits if (th * W) % 256 == 0 or th == H]
        if fits256:
            return max(fits256)
    return max(fits)


def ipg_forward(x, params, *, compute_dtype=jnp.bfloat16, out_dtype=None,
                tile_rows=None):
    """x: (B, C, H, W) float32 -> (B, C, H, W) out_dtype (default float32)."""
    B, C, H, W = x.shape
    HW = H * W
    G = params["num_groups"]
    cdt = compute_dtype
    odt = jnp.dtype(out_dtype) if out_dtype is not None else jnp.dtype(jnp.float32)

    x = x.astype(jnp.float32)
    x_flat = x.reshape(B, C, HW)

    sub = 32 // jnp.dtype(cdt).itemsize              # sublane granule: 8 f32 / 16 bf16
    C_pad = ((C + sub - 1) // sub) * sub

    vmem_cap = _vmem_capacity_bytes()
    if tile_rows is None:
        TH = _choose_tile_rows(H, W, C, C_pad, jnp.dtype(cdt).itemsize,
                               budget_bytes=int(vmem_cap * 0.4))
    else:
        TH = tile_rows
    assert H % TH == 0 and ((TH * W) % 128 == 0 or TH == H), "bad tile_rows"
    T = H // TH
    LT = TH * W

    # ---- pass 1: GroupNorm statistics (partial sums over S parallel halves) ----
    S = 2 if (T >= 2 and T % 2 == 0) else 1
    TS = T // S
    sums = pl.pallas_call(
        _gn_stats_kernel,
        out_shape=jax.ShapeDtypeStruct((B, S, C, 2), jnp.float32),
        grid=(B, S, TS),
        in_specs=[pl.BlockSpec((None, C, LT), lambda b, s, t: (b, 0, s * TS + t))],
        out_specs=pl.BlockSpec((None, None, C, 2), lambda b, s, t: (b, s, 0, 0)),
        compiler_params=pltpu.CompilerParams(
            dimension_semantics=("parallel", "parallel", "arbitrary")),
    )(x_flat)
    sums = sums.sum(axis=1)                          # (B, C, 2)

    # tiny per-(batch, group) finalization, folded to per-channel scale/shift
    cnt = float(HW * (C // G))
    s1g = sums[..., 0].reshape(B, G, C // G).sum(-1)
    s2g = sums[..., 1].reshape(B, G, C // G).sum(-1)
    mean_g = s1g / cnt
    # TODO(synk): one-pass E[x^2]-E[x]^2 variance; switch to shifted/two-pass
    # if inputs may have |mean| >> std.
    var_g = jnp.maximum(s2g / cnt - mean_g * mean_g, 0.0)
    inv_g = jax.lax.rsqrt(var_g + GN_EPS)
    mean_c = jnp.repeat(mean_g, C // G, axis=1)
    inv_c = jnp.repeat(inv_g, C // G, axis=1)
    gn_scale = inv_c * params["gamma"][None, :]
    gn_shift = params["beta"][None, :] - mean_c * gn_scale
    gn_par = jnp.stack([gn_scale, gn_shift], axis=-1).astype(jnp.float32)  # (B,C,2)

    # ---- halo rows per tile (pre-normalized, zero outside image), pipelined ----
    def _l2n(v):   # L2 normalize over the channel axis (axis=1)
        n2 = jnp.sum(v * v, axis=1, keepdims=True)
        return v * jax.lax.rsqrt(jnp.maximum(n2, NORM_EPS * NORM_EPS))

    above_src = x[:, :, TH - 1:H - 1:TH, :]          # (B, C, T-1, W): row above tile t>=1
    below_src = x[:, :, TH:H:TH, :]                  # (B, C, T-1, W): row below tile t<T-1
    zrow = jnp.zeros((B, C, 1, W), jnp.float32)
    above = jnp.concatenate([zrow, _l2n(above_src)], axis=2)      # (B, C, T, W)
    below = jnp.concatenate([_l2n(below_src), zrow], axis=2)      # (B, C, T, W)
    halo = jnp.transpose(jnp.concatenate([above, below], axis=3),
                         (0, 2, 1, 3))                            # (B, T, C, 2W)

    # ---- weight repackaging (matmul form, channels-first, padded K) ----
    wr = jnp.transpose(params["w_att"], (0, 2, 3, 1)).reshape(C, 9, C)
    wcat = jnp.pad(wr, ((0, 0), (0, 0), (0, C_pad - C))).reshape(
        C, 9 * C_pad).astype(cdt)
    wfa = params["w_fa"][:, :, 0, 0].astype(cdt)     # (C, C)   out x in
    w1 = params["w1"][:, :, 0, 0].astype(cdt)        # (2C, C)
    w2 = params["w2"][:, :, 0, 0].astype(cdt)        # (C, 2C)
    bias = jnp.zeros((2 * C, 2), jnp.float32)
    bias = bias.at[:, 0].set(params["b1"])
    bias = bias.at[0:C, 1].set(params["b_fa"])
    bias = bias.at[C:, 1].set(params["b2"])

    pad0 = _pad0(W)
    P = pad0 + (TH + 2) * W + 1                      # normalized-scratch width
    kern = functools.partial(_ipg_main_kernel, W=W, TH=TH, C=C, C_pad=C_pad,
                             pad0=pad0, cdt=cdt)

    out = pl.pallas_call(
        kern,
        out_shape=jax.ShapeDtypeStruct((B, C, HW), odt),
        grid=(B, T),
        in_specs=[
            pl.BlockSpec((None, C, LT), lambda b, t: (b, 0, t)),          # x tile
            pl.BlockSpec((None, None, C, 2 * W), lambda b, t: (b, t, 0, 0)),  # halo rows
            pl.BlockSpec((None, C, 2), lambda b, t: (b, 0, 0)),           # GN scale/shift
            pl.BlockSpec((C, 9 * C_pad), lambda b, t: (0, 0)),            # fused 3x3 weights
            pl.BlockSpec((C, C), lambda b, t: (0, 0)),                    # feature_adapter
            pl.BlockSpec((2 * C, C), lambda b, t: (0, 0)),                # ffn conv1
            pl.BlockSpec((C, 2 * C), lambda b, t: (0, 0)),                # ffn conv2
            pl.BlockSpec((2 * C, 2), lambda b, t: (0, 0)),                # packed biases
        ],
        out_specs=pl.BlockSpec((None, C, LT), lambda b, t: (b, 0, t)),
        scratch_shapes=[
            pltpu.VMEM((C, P), cdt),                 # normalized tile + halo + guards
            pltpu.VMEM((9 * C_pad, LT), cdt),        # explicit fused-matmul operand
        ],
        compiler_params=pltpu.CompilerParams(
            dimension_semantics=("parallel", "parallel"),
            vmem_limit_bytes=min(int(vmem_cap * 0.6), 100 * 2**20)),
    )(x_flat, halo, gn_par, wcat, wfa, w1, w2, bias)

    return out.reshape(B, C, H, W)


# --------------------------------------------------------------------------
# Parameters / pure-JAX reference
# --------------------------------------------------------------------------
def init_params(key, C):
    # num_groups selection mirrors the PyTorch __init__
    G = 1
    for i in range(min(32, C), 0, -1):
        if C % i == 0:
            G = i
            break
    ks = jax.random.split(key, 9)
    return dict(
        num_groups=G,
        w_att=0.2 * jax.random.normal(ks[0], (C, C, 3, 3), jnp.float32),  # OIHW, no bias
        w_fa=0.2 * jax.random.normal(ks[1], (C, C, 1, 1), jnp.float32),
        b_fa=0.1 * jax.random.normal(ks[2], (C,), jnp.float32),
        gamma=1.0 + 0.1 * jax.random.normal(ks[3], (C,), jnp.float32),
        beta=0.1 * jax.random.normal(ks[4], (C,), jnp.float32),
        w1=0.2 * jax.random.normal(ks[5], (2 * C, C, 1, 1), jnp.float32),
        b1=0.1 * jax.random.normal(ks[6], (2 * C,), jnp.float32),
        w2=0.2 * jax.random.normal(ks[7], (C, 2 * C, 1, 1), jnp.float32),
        b2=0.1 * jax.random.normal(ks[8], (C,), jnp.float32),
    )


def ref_forward(x, p):
    """Pure-JAX reference mirroring the PyTorch forward (NCHW)."""
    def conv1x1(z, w, b):
        return jnp.einsum("bchw,oc->bohw", z, w[:, :, 0, 0]) + b[None, :, None, None]

    nrm = jnp.sqrt(jnp.sum(x * x, axis=1, keepdims=True))
    xn = x / jnp.maximum(nrm, NORM_EPS)
    att = jax.lax.conv_general_dilated(
        xn, p["w_att"], (1, 1), "SAME",
        dimension_numbers=("NCHW", "OIHW", "NCHW"))
    att = jax.nn.sigmoid(att)
    enh = x * att
    enh = conv1x1(enh, p["w_fa"], p["b_fa"])

    B, C, H, W = x.shape
    G = p["num_groups"]
    xr = x.reshape(B, G, -1)
    mean = xr.mean(axis=-1, keepdims=True)
    var = jnp.mean((xr - mean) ** 2, axis=-1, keepdims=True)
    xn2 = ((xr - mean) / jnp.sqrt(var + GN_EPS)).reshape(B, C, H, W)
    norm_x = xn2 * p["gamma"][None, :, None, None] + p["beta"][None, :, None, None]

    enh = enh + norm_x
    h = jax.nn.relu(conv1x1(enh, p["w1"], p["b1"]))
    ffn = conv1x1(h, p["w2"], p["b2"])
    return enh + ffn


if __name__ == "__main__":
    key = jax.random.PRNGKey(0)
    kx, kp = jax.random.split(key)
    B, C, H, W = 2, 4, 16, 16
    x = jax.random.normal(kx, (B, C, H, W), jnp.float32)
    params = init_params(kp, C)

    ref = jax.block_until_ready(ref_forward(x, params))

    # f32 matmul path, forced 8-row tiles (exercises multi-tile halo input,
    # split stats accumulation, and cross-tile GroupNorm).
    out32 = jax.block_until_ready(
        ipg_forward(x, params, compute_dtype=jnp.float32, tile_rows=8))
    assert out32.shape == (B, C, H, W)
    assert bool(jnp.all(jnp.isfinite(out32)))
    err32 = float(jnp.max(jnp.abs(out32 - ref)))
    assert err32 < 2e-3, f"f32 mismatch vs reference: {err32}"

    # bf16-matmul path (f32 accumulation), auto tile size, f32 output.
    outbf = jax.block_until_ready(ipg_forward(x, params))
    assert bool(jnp.all(jnp.isfinite(outbf)))
    errbf = float(jnp.max(jnp.abs(outbf - ref)))
    assert errbf < 1e-1, f"bf16 mismatch vs reference: {errbf}"

    # bf16 compute + bf16 output (halves HBM write traffic).
    outb16 = jax.block_until_ready(
        ipg_forward(x, params, out_dtype=jnp.bfloat16))
    assert outb16.dtype == jnp.bfloat16
    assert bool(jnp.all(jnp.isfinite(outb16.astype(jnp.float32))))
    errb16 = float(jnp.max(jnp.abs(outb16.astype(jnp.float32) - ref)))
    assert errb16 < 2e-1, f"bf16-out mismatch vs reference: {errb16}"

    print("KERNEL_OK")
</pallas_src>

<mosaic_0001>
module attributes {stable_mosaic.version = 11 : i64} {
  func.func @_gn_stats_kernel(%arg0: i32, %arg1: i32, %arg2: i32, %arg3: memref<1x4x128xf32, #tpu.memory_space<vmem>>, %arg4: memref<1x1x4x2xf32, #tpu.memory_space<vmem>>) attributes {dimension_semantics = [#tpu.dimension_semantics<parallel>, #tpu.dimension_semantics<parallel>, #tpu.dimension_semantics<arbitrary>], iteration_bounds = array<i64: 2, 2, 1>, scalar_prefetch = 0 : i64, scratch_operands = 0 : i64, tpu.core_type = #tpu.core_type<tc>, window_params = [{transform_indices = @transform_0, window_bounds = array<i64: 1, 4, 128>}, {transform_indices = @transform_1, window_bounds = array<i64: 1, 1, 4, 2>}]} {
    %c0_i32 = arith.constant 0 : i32
    %0 = arith.cmpi eq, %arg2, %c0_i32 : i32
    %1 = arith.extui %0 : i1 to i32
    %c0_i32_0 = arith.constant 0 : i32
    %2 = arith.cmpi ne, %1, %c0_i32_0 : i32
    scf.if %2 {
      %cst_19 = arith.constant 0.000000e+00 : f32
      %22 = vector.broadcast %cst_19 : f32 to vector<4x2xf32>
      %c0_20 = arith.constant 0 : index
      %c0_21 = arith.constant 0 : index
      %c0_22 = arith.constant 0 : index
      %c0_23 = arith.constant 0 : index
      %23 = vector.load %arg4[%c0_20, %c0_21, %c0_22, %c0_23] : memref<1x1x4x2xf32, #tpu.memory_space<vmem>>, vector<1x1x4x2xf32>
      %24 = vector.shape_cast %23 : vector<1x1x4x2xf32> to vector<4x2xf32>
      %25 = vector.shape_cast %22 : vector<4x2xf32> to vector<1x1x4x2xf32>
      tpu.vector_store %arg4[%c0_20, %c0_21, %c0_22, %c0_23], %25 {strides = array<i32>} : memref<1x1x4x2xf32, #tpu.memory_space<vmem>>, vector<1x1x4x2xf32>,
    } else {
    }
    %c0 = arith.constant 0 : index
    %c0_1 = arith.constant 0 : index
    %c0_2 = arith.constant 0 : index
    %3 = vector.load %arg3[%c0, %c0_1, %c0_2] : memref<1x4x128xf32, #tpu.memory_space<vmem>>, vector<1x4x128xf32>
    %4 = vector.shape_cast %3 : vector<1x4x128xf32> to vector<4x128xf32>
    %c0_3 = arith.constant 0 : index
    %c0_4 = arith.constant 0 : index
    %c0_5 = arith.constant 0 : index
    %c0_6 = arith.constant 0 : index
    %5 = vector.load %arg4[%c0_3, %c0_4, %c0_5, %c0_6] : memref<1x1x4x2xf32, #tpu.memory_space<vmem>>, vector<1x1x4x1xf32>
    %6 = vector.shape_cast %5 : vector<1x1x4x1xf32> to vector<4x1xf32>
    %cst = arith.constant dense<0.000000e+00> : vector<4xf32>
    %7 = vector.multi_reduction <add>, %4, %cst [1] : vector<4x128xf32> to vector<4xf32>
    %8 = vector.shape_cast %7 : vector<4xf32> to vector<4x1xf32>
    %9 = arith.addf %6, %8 : vector<4x1xf32>
    %c0_7 = arith.constant 0 : index
    %c0_8 = arith.constant 0 : index
    %c0_9 = arith.constant 0 : index
    %c0_10 = arith.constant 0 : index
    %10 = vector.load %arg4[%c0_7, %c0_8, %c0_9, %c0_10] : memref<1x1x4x2xf32, #tpu.memory_space<vmem>>, vector<1x1x4x1xf32>
    %11 = vector.shape_cast %10 : vector<1x1x4x1xf32> to vector<4x1xf32>
    %12 = vector.shape_cast %9 : vector<4x1xf32> to vector<1x1x4x1xf32>
    tpu.vector_store %arg4[%c0_7, %c0_8, %c0_9, %c0_10], %12 {strides = array<i32>} : memref<1x1x4x2xf32, #tpu.memory_space<vmem>>, vector<1x1x4x1xf32>,
    %c0_11 = arith.constant 0 : index
    %c0_12 = arith.constant 0 : index
    %c0_13 = arith.constant 0 : index
    %c1 = arith.constant 1 : index
    %13 = vector.load %arg4[%c0_11, %c0_12, %c0_13, %c1] : memref<1x1x4x2xf32, #tpu.memory_space<vmem>>, vector<1x1x4x1xf32>
    %14 = vector.shape_cast %13 : vector<1x1x4x1xf32> to vector<4x1xf32>
    %15 = arith.mulf %4, %4 : vector<4x128xf32>
    %cst_14 = arith.constant dense<0.000000e+00> : vector<4xf32>
    %16 = vector.multi_reduction <add>, %15, %cst_14 [1] : vector<4x128xf32> to vector<4xf32>
    %17 = vector.shape_cast %16 : vector<4xf32> to vector<4x1xf32>
    %18 = arith.addf %14, %17 : vector<4x1xf32>
    %c0_15 = arith.constant 0 : index
    %c0_16 = arith.constant 0 : index
    %c0_17 = arith.constant 0 : index
    %c1_18 = arith.constant 1 : index
    %19 = vector.load %arg4[%c0_15, %c0_16, %c0_17, %c1_18] : memref<1x1x4x2xf32, #tpu.memory_space<vmem>>, vector<1x1x4x1xf32>
    %20 = vector.shape_cast %19 : vector<1x1x4x1xf32> to vector<4x1xf32>
    %21 = vector.shape_cast %18 : vector<4x1xf32> to vector<1x1x4x1xf32>
    tpu.vector_store %arg4[%c0_15, %c0_16, %c0_17, %c1_18], %21 {strides = array<i32>} : memref<1x1x4x2xf32, #tpu.memory_space<vmem>>, vector<1x1x4x1xf32>,
    return
  }
  func.func @transform_0(%arg0: i32, %arg1: i32, %arg2: i32) -> (i32, i32, i32) {
    %c1_i32 = arith.constant 1 : i32
    %0 = arith.muli %arg1, %c1_i32 : i32
    %1 = arith.addi %0, %arg2 : i32
    %c0_i32 = arith.constant 0 : i32
    %c0_i32_0 = arith.constant 0 : i32
    return %arg0, %c0_i32, %1 : i32, i32, i32
  }
  func.func @transform_1(%arg0: i32, %arg1: i32, %arg2: i32) -> (i32, i32, i32, i32) {
    %c0_i32 = arith.constant 0 : i32
    %c0_i32_0 = arith.constant 0 : i32
    %c0_i32_1 = arith.constant 0 : i32
    return %arg0, %arg1, %c0_i32, %c0_i32_0 : i32, i32, i32, i32
  }
}

</mosaic_0001>

<llo_original>
// kernel: tpu_custom_call.1
$region0: #{tpu_custom_call.1}
  #allocation0 [shape = 'u32[]', space=smem, size = 0x4, offset = 0x4, fixed_abs, tag = 'smem constant byte address 0x4 - core index']
  #allocation1 [shape = 'u32[144,128]{1,0:T(1,128)}', space=vmem, size = 0x12000, scoped, tag = 'internal scratch']
  %s0 = inlined_call_operand.hbm [shape: f32[2,4,256], index: 0, kind: input, shape index: {}]
  %s1 = inlined_call_operand.vmem [shape: f32[2,2,4,2], index: 1, kind: output, shape index: {}]
  %s2 = sld [smem:[#allocation0]]
  $region45: #{tpu_custom_call.1} parent=0
    _
  %s4 = ssub.s32 1, %s2
  %s5 = scalar_select 0, %s4, %s2
  $region1: #{tpu_custom_call.1} parent=0
    #allocation2 [shape = 'u8[4096]{0}', space=vmem, size = 0x1000, scoped, tag = 'input window, operand 0']
    #allocation3 [shape = 's32[2]{0}', space=sflag, size = 0x8, scoped, tag = 'scoped memory for tpu_custom_call.1']
    %6 = vsyncpa [#allocation3], 0
    %s7 = scalar_lea.sflag [#allocation3], 1
    %8 = vsyncpa %s7, 0
    loop: start=0, step=1, limit=6
    $region2: #{tpu_custom_call.1} parent=1 // loop_pre_header
      _
    $region3: #{tpu_custom_call.1} parent=1 // loop_header
      %s10 = sphi 0, %s14
      %p11 = scmp.ge.s32.totalorder %s10, 6
      %s17 = sphi 0, %s36
      %s18 = sphi 0, %s32
      %s19 = sphi 0, %s28
      %s20 = sphi 0, %s17
      %s21 = sphi 0, %s18
      %s22 = sphi 0, %s19
      %s23 = sphi 0, %s20
      %s24 = sphi 0, %s21
      %s25 = sphi 0, %s22
      %s43 = sphi 0, %s45
      %s46 = sphi 0, %s43
      %s47 = sphi 0, %s46
      %s63 = sphi 0, %s47
      %s71 = sphi 0, %s73
      %s74 = sphi 0, %s71
      %s75 = sphi 0, %s74
      %s91 = sphi 0, %s75
    $region4: #{tpu_custom_call.1} parent=1 // loop_header_branch
      %13 = sbr.rel (%p11) target = $region8
    $region5: #{tpu_custom_call.1} parent=1 // loop_body
      %s15 = ssub.s32 %s10, 1
      %s16 = ssub.s32 %s10, 2
      %s26 = sadd.s32 1, %s19
      %p27 = scmp.ge.s32.totalorder %s26, 1
      %s28 = scalar_select %p27, 0, %s26
      %s29 = sadd.s32 1, %s18
      %s30 = scalar_select %p27, %s29, %s18
      %p31 = scmp.ge.s32.totalorder %s30, 2
      %s32 = scalar_select %p31, 0, %s30
      %s33 = sadd.s32 1, %s17
      %s34 = scalar_select %p31, %s33, %s17
      %p35 = scmp.ge.s32.totalorder %s34, 2
      %s36 = scalar_select %p35, 0, %s34
      %s37 = sadd.s32 %s18, %s19
      %s38 = sadd.s32 %s32, %s28
      %s39 = ssub.s32 %s17, %s36
      %s40 = ssub.s32 %s37, %s38
      %s41 = sor.u32 %s39, %s40
      %p42 = scmp.eq.s32.totalorder %s41, 0
      %s44 = sadd.s32 %s43, 1
      %s45 = scalar_select %p42, %s43, %s44
      %p48 = pneg %p42
      %p49 = scmp.eq.s32.totalorder %s10, 3
      %p50 = por %p48, %p49
      %p51 = scmp.ne.s32.totalorder %s43, %s46
      %p52 = scmp.eq.s32.totalorder %s10, 0
      %p53 = por %p51, %p52
      %p54 = scmp.ne.s32.totalorder %s43, %s46
      %p55 = scmp.eq.s32.totalorder %s15, 3
      %p56 = por %p54, %p55
      %p57 = scmp.ne.s32.totalorder %s46, %s47
      %p58 = scmp.eq.s32.totalorder %s15, 0
      %p59 = por %p57, %p58
      %p60 = scmp.ne.s32.totalorder %s46, %s47
      %p61 = scmp.eq.s32.totalorder %s16, 3
      %p62 = por %p60, %p61
      %p64 = scmp.ne.s32.totalorder %s47, %s63
      %p65 = scmp.eq.s32.totalorder %s16, 0
      %p66 = por %p64, %p65
      %s67 = ssub.s32 %s17, %s36
      %s68 = ssub.s32 %s18, %s32
      %s69 = sor.u32 %s67, %s68
      %p70 = scmp.eq.s32.totalorder %s69, 0
      %s72 = sadd.s32 %s71, 1
      %s73 = scalar_select %p70, %s71, %s72
      %p76 = pneg %p70
      %p77 = scmp.eq.s32.totalorder %s10, 3
      %p78 = por %p76, %p77
      %p79 = scmp.ne.s32.totalorder %s71, %s74
      %p80 = scmp.eq.s32.totalorder %s10, 0
      %p81 = por %p79, %p80
      %p82 = scmp.ne.s32.totalorder %s71, %s74
      %p83 = scmp.eq.s32.totalorder %s15, 3
      %p84 = por %p82, %p83
      %p85 = scmp.ne.s32.totalorder %s74, %s75
      %p86 = scmp.eq.s32.totalorder %s15, 0
      %p87 = por %p85, %p86
      %p88 = scmp.ne.s32.totalorder %s74, %s75
      %p89 = scmp.eq.s32.totalorder %s16, 3
      %p90 = por %p88, %p89
      %p92 = scmp.ne.s32.totalorder %s75, %s91
      %p93 = scmp.eq.s32.totalorder %s16, 0
      %p94 = por %p92, %p93
      %p95 = scmp.le.s32.totalorder 1, %s10
      %p96 = scmp.lt.s32.totalorder %s10, 5
      %p97 = pnand %p95, %p96
      %p98 = pneg %p97
      // Predicated region
      $region9: #{tpu_custom_call.1} parent=5 // pred_check
        _
      $region10: #{tpu_custom_call.1} parent=5 // pred_check_branch
        %100 = sbr.rel (%p97) target = $region12
      $region11: #{tpu_custom_call.1} parent=5 // pred_region
        %s101 = ssub.s32 %s10, 1
      $region12: #{tpu_custom_call.1} parent=5 // pred_fallthru
        _
      %p102 = scmp.lt.s32.totalorder %s10, 4
      // Predicated region
      $region13: #{tpu_custom_call.1} parent=5 // pred_check
        %p103 = pneg %p102
      $region14: #{tpu_custom_call.1} parent=5 // pred_check_branch
        %105 = sbr.rel (%p103) target = $region16
      $region15: #{tpu_custom_call.1} parent=5 // pred_region
        // Predicated region
        $region17: #{tpu_custom_call.1} parent=15 // pred_check
          %p106 = pneg %p53
        $region18: #{tpu_custom_call.1} parent=15 // pred_check_branch
          %108 = sbr.rel (%p106) target = $region20
        $region19: #{tpu_custom_call.1} parent=15 // pred_region
          %s109 = sand.u32 %s43, 1
          %s110 = scalar_lea.sflag [#allocation3], %s109
          %s111 = sand.u32 %s43, 1
          %s112 = smul.addr %s111, 4
          %s113 = scalar_lea.vmem [#allocation2], %s112
          %s114 = sadd.s32 %s18, %s19
          %s116 = ssub.s32 64, 64
          %117 = vsyncadd %s110, %s116
          %s118 = smul.addr %s17, 2
          %s119 = sadd.s32 %s114, %s118
          %s120 = smul.addr %s119, 64
          %s121 = scalar_lea.hbm %s0, %s120
          %s123 = sshll.u32 %s113, 4
          %s124 = int_to_ptr.vmem [resolvable:$true] %s123
          %126 = dma.hbm_to_vmem [thread:$0]  %s121, 64, %s124, %s110
        $region20: #{tpu_custom_call.1} parent=15 // pred_fallthru
          _
      $region16: #{tpu_custom_call.1} parent=5 // pred_fallthru
        _
      %p127 = scmp.le.s32.totalorder 1, %s10
      %p128 = scmp.lt.s32.totalorder %s10, 5
      %p129 = pnand %p127, %p128
      %p130 = pneg %p129
      // Predicated region
      $region21: #{tpu_custom_call.1} parent=5 // pred_check
        _
      $region22: #{tpu_custom_call.1} parent=5 // pred_check_branch
        %132 = sbr.rel (%p129) target = $region24
      $region23: #{tpu_custom_call.1} parent=5 // pred_region
        %s133 = ssub.s32 %s10, 1
        %s134 = sand.u32 %s46, 1
        %s135 = scalar_lea.sflag [#allocation3], %s134
        %s136 = sand.u32 %s46, 1
        %s137 = smul.addr %s136, 4
        %s138 = scalar_lea.vmem [#allocation2], %s137
        // Predicated region
        $region25: #{tpu_custom_call.1} parent=23 // pred_check
          %p139 = pneg %p59
        $region26: #{tpu_custom_call.1} parent=23 // pred_check_branch
          %141 = sbr.rel (%p139) target = $region28
        $region27: #{tpu_custom_call.1} parent=23 // pred_region
          %142 = dma.done %s135, 64
        $region28: #{tpu_custom_call.1} parent=23 // pred_fallthru
          _
        %s143 = sand.u32 %s46, 1
        %s144 = scalar_lea.sflag [#allocation3], %s143
        %s145 = sand.u32 %s46, 1
        %s146 = smul.addr %s145, 4
        %s147 = scalar_lea.vmem [#allocation2], %s146
        %p148 = pneg %p59
        %p149 = pneg %p56
        %p150 = pneg %p87
        %p151 = pneg %p84
        %p152 = scmp.lt.s32.totalorder %s20, 1
        %s153 = scalar_select %p152, %s20, 1
        %p154 = scmp.lt.s32.totalorder %s21, 1
        %s155 = scalar_select %p154, %s21, 1
        %s156 = smul.addr %s153, 2
        %s157 = sadd.s32 %s155, %s156
        %s158 = smul.addr %s157, 4
        %s159 = scalar_lea.vmem %s1, %s158
        %s160 = sadd.s32 %s21, %s22
        %p161 = scmp.lt.s32.totalorder %s20, 1
        %s162 = scalar_select %p161, %s20, 1
        %p163 = scmp.lt.s32.totalorder %s21, 1
        %s164 = scalar_select %p163, %s21, 1
        %s165 = smul.addr %s162, 2
        %s166 = sadd.s32 %s164, %s165
        %s167 = smul.addr %s166, 4
        %s168 = scalar_lea.vmem %s1, %s167
        %p169 = scmp.eq.s32.totalorder %s22, 0
        // Predicated region
        $region29: #{tpu_custom_call.1} parent=23 // pred_check
          %p170 = pneg %p169
        $region30: #{tpu_custom_call.1} parent=23 // pred_check_branch
          %172 = sbr.rel (%p170) target = $region32
        $region31: #{tpu_custom_call.1} parent=23 // pred_region
          %vm173 = vcmask 11264
          %174 = vst.msk [vmem:[%s168] sm:$0xf] %vm173, 0.0
        $region32: #{tpu_custom_call.1} parent=23 // pred_fallthru
          _
        %v175 = vld [vmem:[%s138] sm:$0xf]
        %v176 = vld [vmem:[%s168] sm:$0xf]
        %vm177 = vcmask 1043456
        %v178 = vsel %vm177, %v175, 0.0
        %179 = vadd.xlane.f32.xlu0 %v178
        %v180 = vpop.xlane.xlu0 %179
        %v181 = vadd.f32 %v176, %v180
        %vm182 = vcmask 3072
        %183 = vst.msk [vmem:[%s168] sm:$0xf] %vm182, %v181
        %v184 = vld [vmem:[%s168] sm:$0xf]
        %v185 = vmul.f32 %v175, %v175
        %v186 = vsel %vm177, %v185, 0.0
        %187 = vadd.xlane.f32.xlu0 %v186
        %v188 = vpop.xlane.xlu0 %187
        %v189 = vadd.f32 %v184, %v188
        %vm190 = vcmask 11272
        %191 = vst.msk [vmem:[%s168] sm:$0xf] %vm190, %v189
        %p192 = scmp.lt.s32.totalorder %s20, 1
        %s193 = scalar_select %p192, %s20, 1
        %p194 = scmp.lt.s32.totalorder %s21, 1
        %s195 = scalar_select %p194, %s21, 1
        %s196 = smul.addr %s193, 2
        %s197 = sadd.s32 %s195, %s196
        %s198 = smul.addr %s197, 4
        %s199 = scalar_lea.vmem %s1, %s198
        // Predicated region
        $region33: #{tpu_custom_call.1} parent=23 // pred_check
          %p200 = pneg %p84
        $region34: #{tpu_custom_call.1} parent=23 // pred_check_branch
          %202 = sbr.rel (%p200) target = $region36
        $region35: #{tpu_custom_call.1} parent=23 // pred_region
          _
        $region36: #{tpu_custom_call.1} parent=23 // pred_fallthru
          _
      $region24: #{tpu_custom_call.1} parent=5 // pred_fallthru
        _
      %p203 = scmp.le.s32.totalorder 2, %s10
      // Predicated region
      $region37: #{tpu_custom_call.1} parent=5 // pred_check
        %p204 = pneg %p203
      $region38: #{tpu_custom_call.1} parent=5 // pred_check_branch
        %206 = sbr.rel (%p204) target = $region40
      $region39: #{tpu_custom_call.1} parent=5 // pred_region
        %s207 = ssub.s32 %s10, 2
        // Predicated region
        $region41: #{tpu_custom_call.1} parent=39 // pred_check
          %p208 = pneg %p90
        $region42: #{tpu_custom_call.1} parent=39 // pred_check_branch
          %210 = sbr.rel (%p208) target = $region44
        $region43: #{tpu_custom_call.1} parent=39 // pred_region
          %p211 = scmp.lt.s32.totalorder %s23, 1
          %s212 = scalar_select %p211, %s23, 1
          %p213 = scmp.lt.s32.totalorder %s24, 1
          %s214 = scalar_select %p213, %s24, 1
          %s215 = smul.addr %s212, 2
          %s216 = sadd.s32 %s214, %s215
          %s217 = smul.addr %s216, 4
          %s218 = scalar_lea.vmem %s1, %s217
        $region44: #{tpu_custom_call.1} parent=39 // pred_fallthru
          _
      $region40: #{tpu_custom_call.1} parent=5 // pred_fallthru
        _
    $region6: #{tpu_custom_call.1} parent=1 // loop_footer
      %s14 = sadd.s32 1, %s10
    $region7: #{tpu_custom_call.1} parent=1 // loop_footer_branch
      %9 = sbr.rel target = $region3
    $region8: #{tpu_custom_call.1} parent=1 // loop_exit
      _
    %219 = vsyncpa [#allocation3], 1
    %s220 = scalar_lea.sflag [#allocation3], 1
    %221 = vsyncpa %s220, 1

</llo_original>
